<compile_context>
chip_gen: v5e
topology: v5e:2x2
jax: 0.10.0
libtpu: 0.0.40
codegen_flags: <defaults>
</compile_context>

<pallas_src>
import functools
import math

import jax
import jax.numpy as jnp
from jax import lax
from jax.experimental import pallas as pl
from jax.experimental.pallas import tpu as pltpu


def _dwconv_kernel(x_ref, w_ref, b_ref, o_ref, *, kh, kw, cin, m_mult, h_out):
    """One batch image per grid step.

    x_ref: (1, H, L)          L = Wpad*C_in (multiple of 128), channels innermost
    w_ref: (kh*kw*M, L)       row (i*kw+j)*M + m  = tap (i,j) for multiplier m,
                              lane-tiled across Wpad
    b_ref: (M, L)             bias, lane-tiled
    o_ref: (1, M, h_out, L)   per-multiplier output slabs, same lane folding
    """
    L = x_ref.shape[-1]
    x = x_ref[0]                                        # (H, L)

    accs = [None] * m_mult
    for i in range(kh):
        # Vertical tap shift = row (sublane) offset; i>0 is one sublane-shuffle copy.
        xi = x[i:i + h_out, :]                          # (h_out, L)
        for j in range(kw):
            # Horizontal tap shift = lane rotation by j*C_in (XLU slot, co-issues
            # with the VPU FMAs).  Wrapped lanes land at positions >= w_out*C_in
            # and are sliced off in the wrapper, so they never reach the output.
            xij = xi if j == 0 else pltpu.roll(xi, L - j * cin, axis=1)
            t = i * kw + j
            for m in range(m_mult):
                # Multiply in the native dtype (bf16 OK on v6e/v7x), accumulate f32.
                tap = (w_ref[t * m_mult + m, :] * xij).astype(jnp.float32)
                if t == 0:
                    # Fold the bias into the first tap (saves one full-tile add).
                    accs[m] = b_ref[m, :].astype(jnp.float32) + tap
                else:
                    accs[m] = accs[m] + tap

    for m in range(m_mult):
        # Full-lane (multiple-of-128) unmasked store per multiplier slab.
        o_ref[0, m, :, :] = accs[m].astype(o_ref.dtype)


@functools.partial(jax.jit, static_argnames=("depthwise_multiplier",))
def depthwise_conv2d(x, weight, bias, *, depthwise_multiplier):
    """x: (B, C_in, H, W); weight: (C_in*M, 1, kh, kw); bias: (C_in*M,).

    Implements stride=1, padding=0, dilation=1 (PyTorch nn.Conv2d defaults).
    """
    B, C_in, H, W = x.shape
    M = depthwise_multiplier
    C_out, _, kh, kw = weight.shape
    assert C_out == C_in * M
    h_out, w_out = H - kh + 1, W - kw + 1

    # Lane-fold (W, C_in) into one trailing dim padded so L = Wpad*C_in % 128 == 0.
    w_step = 128 // math.gcd(C_in, 128)
    Wpad = -(-W // w_step) * w_step
    L = Wpad * C_in

    # TODO(synk): the NCHW<->packed-NHWC transposes below are imposed by the NCHW
    # module interface; keep activations in the packed layout end-to-end in the
    # surrounding model to drop these two extra HBM passes.
    x_nhwc = jnp.transpose(x, (0, 2, 3, 1))                         # (B, H, W, C_in)
    if Wpad != W:
        x_nhwc = jnp.pad(x_nhwc, ((0, 0), (0, 0), (0, Wpad - W), (0, 0)))
    x_pack = x_nhwc.reshape(B, H, L)                                # (B, H, L)

    # Per-tap, per-multiplier lane vectors tiled across Wpad:
    #   w_lane[(i*kw+j)*M + m, w*C_in + c] = weight[c*M + m, 0, i, j]
    w_tap = jnp.transpose(weight.reshape(C_in, M, kh, kw), (2, 3, 1, 0))
    w_lane = jnp.tile(w_tap.reshape(kh * kw * M, C_in), (1, Wpad))  # (kh*kw*M, L)
    b_lane = jnp.tile(bias.reshape(C_in, M).T, (1, Wpad))           # (M, L)

    kernel = functools.partial(
        _dwconv_kernel, kh=kh, kw=kw, cin=C_in, m_mult=M, h_out=h_out)

    out_pack = pl.pallas_call(
        kernel,
        out_shape=jax.ShapeDtypeStruct((B, M, h_out, L), x.dtype),
        grid_spec=pltpu.PrefetchScalarGridSpec(
            num_scalar_prefetch=0,
            # One image per step; batch axis "parallel" shards across v7x's 2 TCs.
            # TODO(synk): for production-size images add a row-tile grid axis with
            # halo rows fetched via memory_space=pl.ANY + pltpu.make_async_copy,
            # and re-derive the tile / vmem_limit_bytes for v7x's 64 MiB VMEM.
            grid=(B,),
            in_specs=[
                pl.BlockSpec((1, H, L), lambda b: (b, 0, 0)),
                pl.BlockSpec((kh * kw * M, L), lambda b: (0, 0)),
                pl.BlockSpec((M, L), lambda b: (0, 0)),
            ],
            out_specs=pl.BlockSpec((1, M, h_out, L), lambda b: (b, 0, 0, 0)),
        ),
        compiler_params=pltpu.CompilerParams(
            dimension_semantics=("parallel",)),
    )(x_pack, w_lane, b_lane)

    # Unpack: drop padded columns, restore PyTorch channel order o = c*M + m, NCHW.
    out = out_pack[:, :, :, : w_out * C_in].reshape(B, M, h_out, w_out, C_in)
    out = jnp.transpose(out, (0, 4, 1, 2, 3)).reshape(B, C_out, h_out, w_out)
    return out


def _reference(x, weight, bias, groups):
    # Grouped conv reference in plain JAX (NCHW, OIHW).
    out = lax.conv_general_dilated(
        x, weight,
        window_strides=(1, 1), padding="VALID",
        dimension_numbers=("NCHW", "OIHW", "NCHW"),
        feature_group_count=groups,
    )
    return out + bias[None, :, None, None]


if __name__ == "__main__":
    key = jax.random.PRNGKey(0)
    kx, kw_, kb = jax.random.split(key, 3)

    B, C_in, H, W = 2, 4, 16, 16
    kernel_size = 3
    depthwise_multiplier = 2
    C_out = C_in * depthwise_multiplier

    x = jax.random.normal(kx, (B, C_in, H, W), dtype=jnp.float32)
    # Deterministic parameter init (shapes match nn.Conv2d(groups=C_in)).
    fan_in = 1 * kernel_size * kernel_size
    bound = 1.0 / (fan_in ** 0.5)
    weight = jax.random.uniform(
        kw_, (C_out, 1, kernel_size, kernel_size),
        minval=-bound, maxval=bound, dtype=jnp.float32)
    bias = jax.random.uniform(
        kb, (C_out,), minval=-bound, maxval=bound, dtype=jnp.float32)

    out = depthwise_conv2d(
        x, weight, bias, depthwise_multiplier=depthwise_multiplier)
    out = jax.block_until_ready(out)

    ref = _reference(x, weight, bias, groups=C_in)
    assert out.shape == (B, C_out, H - kernel_size + 1, W - kernel_size + 1)
    assert jnp.allclose(out, ref, atol=1e-5, rtol=1e-5)

    print("KERNEL_OK")
</pallas_src>

<mosaic_0001>
module attributes {stable_mosaic.version = 11 : i64} {
  func.func @_dwconv_kernel(%arg0: i32, %arg1: memref<1x16x128xf32, #tpu.memory_space<vmem>>, %arg2: memref<18x128xf32, #tpu.memory_space<vmem>>, %arg3: memref<2x128xf32, #tpu.memory_space<vmem>>, %arg4: memref<1x2x14x128xf32, #tpu.memory_space<vmem>>) attributes {dimension_semantics = [#tpu.dimension_semantics<parallel>], iteration_bounds = array<i64: 2>, scalar_prefetch = 0 : i64, scratch_operands = 0 : i64, tpu.core_type = #tpu.core_type<tc>, window_params = [{transform_indices = @transform_0, window_bounds = array<i64: 1, 16, 128>}, {pipeline_mode = #tpu.pipeline_mode<synchronous>, transform_indices = @transform_1, window_bounds = array<i64: 18, 128>}, {pipeline_mode = #tpu.pipeline_mode<synchronous>, transform_indices = @transform_2, window_bounds = array<i64: 2, 128>}, {transform_indices = @transform_3, window_bounds = array<i64: 1, 2, 14, 128>}]} {
    %c0 = arith.constant 0 : index
    %c0_0 = arith.constant 0 : index
    %c0_1 = arith.constant 0 : index
    %0 = vector.load %arg1[%c0, %c0_0, %c0_1] : memref<1x16x128xf32, #tpu.memory_space<vmem>>, vector<1x16x128xf32>
    %1 = vector.shape_cast %0 : vector<1x16x128xf32> to vector<16x128xf32>
    %2 = vector.extract_strided_slice %1 {offsets = [0, 0], sizes = [14, 128], strides = [1, 1]} : vector<16x128xf32> to vector<14x128xf32>
    %c0_2 = arith.constant 0 : index
    %c0_3 = arith.constant 0 : index
    %3 = vector.load %arg2[%c0_2, %c0_3] : memref<18x128xf32, #tpu.memory_space<vmem>>, vector<1x128xf32>
    %4 = vector.shape_cast %3 : vector<1x128xf32> to vector<128xf32>
    %5 = vector.shape_cast %4 : vector<128xf32> to vector<1x128xf32>
    %6 = vector.broadcast %5 : vector<1x128xf32> to vector<14x128xf32>
    %7 = arith.mulf %6, %2 : vector<14x128xf32>
    %c0_4 = arith.constant 0 : index
    %c0_5 = arith.constant 0 : index
    %8 = vector.load %arg3[%c0_4, %c0_5] : memref<2x128xf32, #tpu.memory_space<vmem>>, vector<1x128xf32>
    %9 = vector.shape_cast %8 : vector<1x128xf32> to vector<128xf32>
    %10 = vector.shape_cast %9 : vector<128xf32> to vector<1x128xf32>
    %11 = vector.broadcast %10 : vector<1x128xf32> to vector<14x128xf32>
    %12 = arith.addf %11, %7 : vector<14x128xf32>
    %c1 = arith.constant 1 : index
    %c0_6 = arith.constant 0 : index
    %13 = vector.load %arg2[%c1, %c0_6] : memref<18x128xf32, #tpu.memory_space<vmem>>, vector<1x128xf32>
    %14 = vector.shape_cast %13 : vector<1x128xf32> to vector<128xf32>
    %15 = vector.shape_cast %14 : vector<128xf32> to vector<1x128xf32>
    %16 = vector.broadcast %15 : vector<1x128xf32> to vector<14x128xf32>
    %17 = arith.mulf %16, %2 : vector<14x128xf32>
    %c1_7 = arith.constant 1 : index
    %c0_8 = arith.constant 0 : index
    %18 = vector.load %arg3[%c1_7, %c0_8] : memref<2x128xf32, #tpu.memory_space<vmem>>, vector<1x128xf32>
    %19 = vector.shape_cast %18 : vector<1x128xf32> to vector<128xf32>
    %20 = vector.shape_cast %19 : vector<128xf32> to vector<1x128xf32>
    %21 = vector.broadcast %20 : vector<1x128xf32> to vector<14x128xf32>
    %22 = arith.addf %21, %17 : vector<14x128xf32>
    %c124_i32 = arith.constant 124 : i32
    %23 = tpu.dynamic_rotate %2 by %c124_i32 dim 1 : vector<14x128xf32>, i32 -> vector<14x128xf32>
    %c2 = arith.constant 2 : index
    %c0_9 = arith.constant 0 : index
    %24 = vector.load %arg2[%c2, %c0_9] : memref<18x128xf32, #tpu.memory_space<vmem>>, vector<1x128xf32>
    %25 = vector.shape_cast %24 : vector<1x128xf32> to vector<128xf32>
    %26 = vector.shape_cast %25 : vector<128xf32> to vector<1x128xf32>
    %27 = vector.broadcast %26 : vector<1x128xf32> to vector<14x128xf32>
    %28 = arith.mulf %27, %23 : vector<14x128xf32>
    %29 = arith.addf %12, %28 : vector<14x128xf32>
    %c3 = arith.constant 3 : index
    %c0_10 = arith.constant 0 : index
    %30 = vector.load %arg2[%c3, %c0_10] : memref<18x128xf32, #tpu.memory_space<vmem>>, vector<1x128xf32>
    %31 = vector.shape_cast %30 : vector<1x128xf32> to vector<128xf32>
    %32 = vector.shape_cast %31 : vector<128xf32> to vector<1x128xf32>
    %33 = vector.broadcast %32 : vector<1x128xf32> to vector<14x128xf32>
    %34 = arith.mulf %33, %23 : vector<14x128xf32>
    %35 = arith.addf %22, %34 : vector<14x128xf32>
    %c120_i32 = arith.constant 120 : i32
    %36 = tpu.dynamic_rotate %2 by %c120_i32 dim 1 : vector<14x128xf32>, i32 -> vector<14x128xf32>
    %c4 = arith.constant 4 : index
    %c0_11 = arith.constant 0 : index
    %37 = vector.load %arg2[%c4, %c0_11] : memref<18x128xf32, #tpu.memory_space<vmem>>, vector<1x128xf32>
    %38 = vector.shape_cast %37 : vector<1x128xf32> to vector<128xf32>
    %39 = vector.shape_cast %38 : vector<128xf32> to vector<1x128xf32>
    %40 = vector.broadcast %39 : vector<1x128xf32> to vector<14x128xf32>
    %41 = arith.mulf %40, %36 : vector<14x128xf32>
    %42 = arith.addf %29, %41 : vector<14x128xf32>
    %c5 = arith.constant 5 : index
    %c0_12 = arith.constant 0 : index
    %43 = vector.load %arg2[%c5, %c0_12] : memref<18x128xf32, #tpu.memory_space<vmem>>, vector<1x128xf32>
    %44 = vector.shape_cast %43 : vector<1x128xf32> to vector<128xf32>
    %45 = vector.shape_cast %44 : vector<128xf32> to vector<1x128xf32>
    %46 = vector.broadcast %45 : vector<1x128xf32> to vector<14x128xf32>
    %47 = arith.mulf %46, %36 : vector<14x128xf32>
    %48 = arith.addf %35, %47 : vector<14x128xf32>
    %49 = vector.extract_strided_slice %1 {offsets = [1, 0], sizes = [14, 128], strides = [1, 1]} : vector<16x128xf32> to vector<14x128xf32>
    %c6 = arith.constant 6 : index
    %c0_13 = arith.constant 0 : index
    %50 = vector.load %arg2[%c6, %c0_13] : memref<18x128xf32, #tpu.memory_space<vmem>>, vector<1x128xf32>
    %51 = vector.shape_cast %50 : vector<1x128xf32> to vector<128xf32>
    %52 = vector.shape_cast %51 : vector<128xf32> to vector<1x128xf32>
    %53 = vector.broadcast %52 : vector<1x128xf32> to vector<14x128xf32>
    %54 = arith.mulf %53, %49 : vector<14x128xf32>
    %55 = arith.addf %42, %54 : vector<14x128xf32>
    %c7 = arith.constant 7 : index
    %c0_14 = arith.constant 0 : index
    %56 = vector.load %arg2[%c7, %c0_14] : memref<18x128xf32, #tpu.memory_space<vmem>>, vector<1x128xf32>
    %57 = vector.shape_cast %56 : vector<1x128xf32> to vector<128xf32>
    %58 = vector.shape_cast %57 : vector<128xf32> to vector<1x128xf32>
    %59 = vector.broadcast %58 : vector<1x128xf32> to vector<14x128xf32>
    %60 = arith.mulf %59, %49 : vector<14x128xf32>
    %61 = arith.addf %48, %60 : vector<14x128xf32>
    %c124_i32_15 = arith.constant 124 : i32
    %62 = tpu.dynamic_rotate %49 by %c124_i32_15 dim 1 : vector<14x128xf32>, i32 -> vector<14x128xf32>
    %c8 = arith.constant 8 : index
    %c0_16 = arith.constant 0 : index
    %63 = vector.load %arg2[%c8, %c0_16] : memref<18x128xf32, #tpu.memory_space<vmem>>, vector<1x128xf32>
    %64 = vector.shape_cast %63 : vector<1x128xf32> to vector<128xf32>
    %65 = vector.shape_cast %64 : vector<128xf32> to vector<1x128xf32>
    %66 = vector.broadcast %65 : vector<1x128xf32> to vector<14x128xf32>
    %67 = arith.mulf %66, %62 : vector<14x128xf32>
    %68 = arith.addf %55, %67 : vector<14x128xf32>
    %c9 = arith.constant 9 : index
    %c0_17 = arith.constant 0 : index
    %69 = vector.load %arg2[%c9, %c0_17] : memref<18x128xf32, #tpu.memory_space<vmem>>, vector<1x128xf32>
    %70 = vector.shape_cast %69 : vector<1x128xf32> to vector<128xf32>
    %71 = vector.shape_cast %70 : vector<128xf32> to vector<1x128xf32>
    %72 = vector.broadcast %71 : vector<1x128xf32> to vector<14x128xf32>
    %73 = arith.mulf %72, %62 : vector<14x128xf32>
    %74 = arith.addf %61, %73 : vector<14x128xf32>
    %c120_i32_18 = arith.constant 120 : i32
    %75 = tpu.dynamic_rotate %49 by %c120_i32_18 dim 1 : vector<14x128xf32>, i32 -> vector<14x128xf32>
    %c10 = arith.constant 10 : index
    %c0_19 = arith.constant 0 : index
    %76 = vector.load %arg2[%c10, %c0_19] : memref<18x128xf32, #tpu.memory_space<vmem>>, vector<1x128xf32>
    %77 = vector.shape_cast %76 : vector<1x128xf32> to vector<128xf32>
    %78 = vector.shape_cast %77 : vector<128xf32> to vector<1x128xf32>
    %79 = vector.broadcast %78 : vector<1x128xf32> to vector<14x128xf32>
    %80 = arith.mulf %79, %75 : vector<14x128xf32>
    %81 = arith.addf %68, %80 : vector<14x128xf32>
    %c11 = arith.constant 11 : index
    %c0_20 = arith.constant 0 : index
    %82 = vector.load %arg2[%c11, %c0_20] : memref<18x128xf32, #tpu.memory_space<vmem>>, vector<1x128xf32>
    %83 = vector.shape_cast %82 : vector<1x128xf32> to vector<128xf32>
    %84 = vector.shape_cast %83 : vector<128xf32> to vector<1x128xf32>
    %85 = vector.broadcast %84 : vector<1x128xf32> to vector<14x128xf32>
    %86 = arith.mulf %85, %75 : vector<14x128xf32>
    %87 = arith.addf %74, %86 : vector<14x128xf32>
    %88 = vector.extract_strided_slice %1 {offsets = [2, 0], sizes = [14, 128], strides = [1, 1]} : vector<16x128xf32> to vector<14x128xf32>
    %c12 = arith.constant 12 : index
    %c0_21 = arith.constant 0 : index
    %89 = vector.load %arg2[%c12, %c0_21] : memref<18x128xf32, #tpu.memory_space<vmem>>, vector<1x128xf32>
    %90 = vector.shape_cast %89 : vector<1x128xf32> to vector<128xf32>
    %91 = vector.shape_cast %90 : vector<128xf32> to vector<1x128xf32>
    %92 = vector.broadcast %91 : vector<1x128xf32> to vector<14x128xf32>
    %93 = arith.mulf %92, %88 : vector<14x128xf32>
    %94 = arith.addf %81, %93 : vector<14x128xf32>
    %c13 = arith.constant 13 : index
    %c0_22 = arith.constant 0 : index
    %95 = vector.load %arg2[%c13, %c0_22] : memref<18x128xf32, #tpu.memory_space<vmem>>, vector<1x128xf32>
    %96 = vector.shape_cast %95 : vector<1x128xf32> to vector<128xf32>
    %97 = vector.shape_cast %96 : vector<128xf32> to vector<1x128xf32>
    %98 = vector.broadcast %97 : vector<1x128xf32> to vector<14x128xf32>
    %99 = arith.mulf %98, %88 : vector<14x128xf32>
    %100 = arith.addf %87, %99 : vector<14x128xf32>
    %c124_i32_23 = arith.constant 124 : i32
    %101 = tpu.dynamic_rotate %88 by %c124_i32_23 dim 1 : vector<14x128xf32>, i32 -> vector<14x128xf32>
    %c14 = arith.constant 14 : index
    %c0_24 = arith.constant 0 : index
    %102 = vector.load %arg2[%c14, %c0_24] : memref<18x128xf32, #tpu.memory_space<vmem>>, vector<1x128xf32>
    %103 = vector.shape_cast %102 : vector<1x128xf32> to vector<128xf32>
    %104 = vector.shape_cast %103 : vector<128xf32> to vector<1x128xf32>
    %105 = vector.broadcast %104 : vector<1x128xf32> to vector<14x128xf32>
    %106 = arith.mulf %105, %101 : vector<14x128xf32>
    %107 = arith.addf %94, %106 : vector<14x128xf32>
    %c15 = arith.constant 15 : index
    %c0_25 = arith.constant 0 : index
    %108 = vector.load %arg2[%c15, %c0_25] : memref<18x128xf32, #tpu.memory_space<vmem>>, vector<1x128xf32>
    %109 = vector.shape_cast %108 : vector<1x128xf32> to vector<128xf32>
    %110 = vector.shape_cast %109 : vector<128xf32> to vector<1x128xf32>
    %111 = vector.broadcast %110 : vector<1x128xf32> to vector<14x128xf32>
    %112 = arith.mulf %111, %101 : vector<14x128xf32>
    %113 = arith.addf %100, %112 : vector<14x128xf32>
    %c120_i32_26 = arith.constant 120 : i32
    %114 = tpu.dynamic_rotate %88 by %c120_i32_26 dim 1 : vector<14x128xf32>, i32 -> vector<14x128xf32>
    %c16 = arith.constant 16 : index
    %c0_27 = arith.constant 0 : index
    %115 = vector.load %arg2[%c16, %c0_27] : memref<18x128xf32, #tpu.memory_space<vmem>>, vector<1x128xf32>
    %116 = vector.shape_cast %115 : vector<1x128xf32> to vector<128xf32>
    %117 = vector.shape_cast %116 : vector<128xf32> to vector<1x128xf32>
    %118 = vector.broadcast %117 : vector<1x128xf32> to vector<14x128xf32>
    %119 = arith.mulf %118, %114 : vector<14x128xf32>
    %120 = arith.addf %107, %119 : vector<14x128xf32>
    %c17 = arith.constant 17 : index
    %c0_28 = arith.constant 0 : index
    %121 = vector.load %arg2[%c17, %c0_28] : memref<18x128xf32, #tpu.memory_space<vmem>>, vector<1x128xf32>
    %122 = vector.shape_cast %121 : vector<1x128xf32> to vector<128xf32>
    %123 = vector.shape_cast %122 : vector<128xf32> to vector<1x128xf32>
    %124 = vector.broadcast %123 : vector<1x128xf32> to vector<14x128xf32>
    %125 = arith.mulf %124, %114 : vector<14x128xf32>
    %126 = arith.addf %113, %125 : vector<14x128xf32>
    %c0_29 = arith.constant 0 : index
    %c0_30 = arith.constant 0 : index
    %c0_31 = arith.constant 0 : index
    %c0_32 = arith.constant 0 : index
    %127 = vector.load %arg4[%c0_29, %c0_30, %c0_31, %c0_32] : memref<1x2x14x128xf32, #tpu.memory_space<vmem>>, vector<1x1x14x128xf32>
    %128 = vector.shape_cast %127 : vector<1x1x14x128xf32> to vector<14x128xf32>
    %129 = vector.shape_cast %120 : vector<14x128xf32> to vector<1x1x14x128xf32>
    tpu.vector_store %arg4[%c0_29, %c0_30, %c0_31, %c0_32], %129 {strides = array<i32>} : memref<1x2x14x128xf32, #tpu.memory_space<vmem>>, vector<1x1x14x128xf32>,
    %c0_33 = arith.constant 0 : index
    %c1_34 = arith.constant 1 : index
    %c0_35 = arith.constant 0 : index
    %c0_36 = arith.constant 0 : index
    %130 = vector.load %arg4[%c0_33, %c1_34, %c0_35, %c0_36] : memref<1x2x14x128xf32, #tpu.memory_space<vmem>>, vector<1x1x14x128xf32>
    %131 = vector.shape_cast %130 : vector<1x1x14x128xf32> to vector<14x128xf32>
    %132 = vector.shape_cast %126 : vector<14x128xf32> to vector<1x1x14x128xf32>
    tpu.vector_store %arg4[%c0_33, %c1_34, %c0_35, %c0_36], %132 {strides = array<i32>} : memref<1x2x14x128xf32, #tpu.memory_space<vmem>>, vector<1x1x14x128xf32>,
    return
  }
  func.func @transform_0(%arg0: i32) -> (i32, i32, i32) {
    %c0_i32 = arith.constant 0 : i32
    %c0_i32_0 = arith.constant 0 : i32
    %c0_i32_1 = arith.constant 0 : i32
    return %arg0, %c0_i32, %c0_i32_0 : i32, i32, i32
  }
  func.func @transform_1(%arg0: i32) -> (i32, i32) {
    %c0_i32 = arith.constant 0 : i32
    %c0_i32_0 = arith.constant 0 : i32
    %c0_i32_1 = arith.constant 0 : i32
    return %c0_i32, %c0_i32_0 : i32, i32
  }
  func.func @transform_2(%arg0: i32) -> (i32, i32) {
    %c0_i32 = arith.constant 0 : i32
    %c0_i32_0 = arith.constant 0 : i32
    %c0_i32_1 = arith.constant 0 : i32
    return %c0_i32, %c0_i32_0 : i32, i32
  }
  func.func @transform_3(%arg0: i32) -> (i32, i32, i32, i32) {
    %c0_i32 = arith.constant 0 : i32
    %c0_i32_0 = arith.constant 0 : i32
    %c0_i32_1 = arith.constant 0 : i32
    %c0_i32_2 = arith.constant 0 : i32
    return %arg0, %c0_i32, %c0_i32_0, %c0_i32_1 : i32, i32, i32, i32
  }
}

</mosaic_0001>

<llo_original>
// kernel: tile.17
$region0: #{tile.17}
  %s0 = inlined_call_operand.vmem [shape: f32[2,32,4], index: 0, kind: input, shape index: {}]
  %s1 = inlined_call_operand.vmem [shape: f32[2,128], index: 1, kind: output, shape index: {}]
  $region1: #{tile.17} parent=0
    #allocation0 [shape = 'u8[4096]{0}', space=vmem, size = 0x1000, scoped, tag = 'scoped mem for output reshape']
    %v2 = vld [vmem:[%s0] sm:$0x1]
    %s3 = scalar_lea.vmem %s0, 31
    %v4 = vld [vmem:[%s3] sm:$0x2]
    %vm5 = vcmask 1041409
    %v6 = vsel %vm5, %v4, %v2
    %vm7 = vcmask 31744
    %8 = vst.msk [vmem:[#allocation0] sm:$0x3] %vm7, %v6
    %s9 = scalar_lea.vmem %s0, 31
    %v10 = vld [vmem:[%s9] sm:$0x1]
    %s11 = scalar_lea.vmem %s0, 62
    %v12 = vld [vmem:[%s11] sm:$0x2]
    %vm13 = vcmask 1041409
    %v14 = vsel %vm13, %v12, %v10
    %15 = vrot.lane.b32.xlu0 %v14, 124
    %v16 = vpop.permute.xlu0 %15
    %vm17 = vcmask 1048544
    %18 = vst.msk [vmem:[#allocation0] sm:$0x3] %vm17, %v16
    %s19 = scalar_lea.vmem %s0, 30
    %v20 = vld [vmem:[%s19] sm:$0x1]
    %s21 = scalar_lea.vmem %s0, 61
    %v22 = vld [vmem:[%s21] sm:$0x2]
    %vm23 = vcmask 1041409
    %v24 = vsel %vm23, %v22, %v20
    %25 = vrot.lane.b32.xlu0 %v24, 120
    %v26 = vpop.permute.xlu0 %25
    %vm27 = vcmask 1015744
    %28 = vst.msk [vmem:[#allocation0] sm:$0x3] %vm27, %v26
    %s29 = scalar_lea.vmem %s0, 29
    %v30 = vld [vmem:[%s29] sm:$0x1]
    %s31 = scalar_lea.vmem %s0, 60
    %v32 = vld [vmem:[%s31] sm:$0x2]
    %vm33 = vcmask 1041409
    %v34 = vsel %vm33, %v32, %v30
    %35 = vrot.lane.b32.xlu0 %v34, 116
    %v36 = vpop.permute.xlu0 %35
    %vm37 = vcmask 982944
    %38 = vst.msk [vmem:[#allocation0] sm:$0x3] %vm37, %v36
    %s39 = scalar_lea.vmem %s0, 28
    %v40 = vld [vmem:[%s39] sm:$0x1]
    %s41 = scalar_lea.vmem %s0, 59
    %v42 = vld [vmem:[%s41] sm:$0x2]
    %vm43 = vcmask 1041409
    %v44 = vsel %vm43, %v42, %v40
    %45 = vrot.lane.b32.xlu0 %v44, 112
    %v46 = vpop.permute.xlu0 %45
    %vm47 = vcmask 950144
    %48 = vst.msk [vmem:[#allocation0] sm:$0x3] %vm47, %v46
    %s49 = scalar_lea.vmem %s0, 27
    %v50 = vld [vmem:[%s49] sm:$0x1]
    %s51 = scalar_lea.vmem %s0, 58
    %v52 = vld [vmem:[%s51] sm:$0x2]
    %vm53 = vcmask 1041409
    %v54 = vsel %vm53, %v52, %v50
    %55 = vrot.lane.b32.xlu0 %v54, 108
    %v56 = vpop.permute.xlu0 %55
    %vm57 = vcmask 917344
    %58 = vst.msk [vmem:[#allocation0] sm:$0x3] %vm57, %v56
    %s59 = scalar_lea.vmem %s0, 26
    %v60 = vld [vmem:[%s59] sm:$0x1]
    %s61 = scalar_lea.vmem %s0, 57
    %v62 = vld [vmem:[%s61] sm:$0x2]
    %vm63 = vcmask 1041409
    %v64 = vsel %vm63, %v62, %v60
    %65 = vrot.lane.b32.xlu0 %v64, 104
    %v66 = vpop.permute.xlu0 %65
    %vm67 = vcmask 884544
    %68 = vst.msk [vmem:[#allocation0] sm:$0x3] %vm67, %v66
    %s69 = scalar_lea.vmem %s0, 25
    %v70 = vld [vmem:[%s69] sm:$0x1]
    %s71 = scalar_lea.vmem %s0, 56
    %v72 = vld [vmem:[%s71] sm:$0x2]
    %vm73 = vcmask 1041409
    %v74 = vsel %vm73, %v72, %v70
    %75 = vrot.lane.b32.xlu0 %v74, 100
    %v76 = vpop.permute.xlu0 %75
    %vm77 = vcmask 851744
    %78 = vst.msk [vmem:[#allocation0] sm:$0x3] %vm77, %v76
    %s79 = scalar_lea.vmem %s0, 24
    %v80 = vld [vmem:[%s79] sm:$0x1]
    %s81 = scalar_lea.vmem %s0, 55
    %v82 = vld [vmem:[%s81] sm:$0x2]
    %vm83 = vcmask 1041409
    %v84 = vsel %vm83, %v82, %v80
    %85 = vrot.lane.b32.xlu0 %v84, 96
    %v86 = vpop.permute.xlu0 %85
    %vm87 = vcmask 818944
    %88 = vst.msk [vmem:[#allocation0] sm:$0x3] %vm87, %v86
    %s89 = scalar_lea.vmem %s0, 23
    %v90 = vld [vmem:[%s89] sm:$0x1]
    %s91 = scalar_lea.vmem %s0, 54
    %v92 = vld [vmem:[%s91] sm:$0x2]
    %vm93 = vcmask 1041409
    %v94 = vsel %vm93, %v92, %v90
    %95 = vrot.lane.b32.xlu0 %v94, 92
    %v96 = vpop.permute.xlu0 %95
    %vm97 = vcmask 786144
    %98 = vst.msk [vmem:[#allocation0] sm:$0x3] %vm97, %v96
    %s99 = scalar_lea.vmem %s0, 22
    %v100 = vld [vmem:[%s99] sm:$0x1]
    %s101 = scalar_lea.vmem %s0, 53
    %v102 = vld [vmem:[%s101] sm:$0x2]
    %vm103 = vcmask 1041409
    %v104 = vsel %vm103, %v102, %v100
    %105 = vrot.lane.b32.xlu0 %v104, 88
    %v106 = vpop.permute.xlu0 %105
    %vm107 = vcmask 753344
    %108 = vst.msk [vmem:[#allocation0] sm:$0x3] %vm107, %v106
    %s109 = scalar_lea.vmem %s0, 21
    %v110 = vld [vmem:[%s109] sm:$0x1]
    %s111 = scalar_lea.vmem %s0, 52
    %v112 = vld [vmem:[%s111] sm:$0x2]
    %vm113 = vcmask 1041409
    %v114 = vsel %vm113, %v112, %v110
    %115 = vrot.lane.b32.xlu0 %v114, 84
    %v116 = vpop.permute.xlu0 %115
    %vm117 = vcmask 720544
    %118 = vst.msk [vmem:[#allocation0] sm:$0x3] %vm117, %v116
    %s119 = scalar_lea.vmem %s0, 20
    %v120 = vld [vmem:[%s119] sm:$0x1]
    %s121 = scalar_lea.vmem %s0, 51
    %v122 = vld [vmem:[%s121] sm:$0x2]
    %vm123 = vcmask 1041409
    %v124 = vsel %vm123, %v122, %v120
    %125 = vrot.lane.b32.xlu0 %v124, 80
    %v126 = vpop.permute.xlu0 %125
    %vm127 = vcmask 687744
    %128 = vst.msk [vmem:[#allocation0] sm:$0x3] %vm127, %v126
    %s129 = scalar_lea.vmem %s0, 19
    %v130 = vld [vmem:[%s129] sm:$0x1]
    %s131 = scalar_lea.vmem %s0, 50
    %v132 = vld [vmem:[%s131] sm:$0x2]
    %vm133 = vcmask 1041409
    %v134 = vsel %vm133, %v132, %v130
    %135 = vrot.lane.b32.xlu0 %v134, 76
    %v136 = vpop.permute.xlu0 %135
    %vm137 = vcmask 654944
    %138 = vst.msk [vmem:[#allocation0] sm:$0x3] %vm137, %v136
    %s139 = scalar_lea.vmem %s0, 18
    %v140 = vld [vmem:[%s139] sm:$0x1]
    %s141 = scalar_lea.vmem %s0, 49
    %v142 = vld [vmem:[%s141] sm:$0x2]
    %vm143 = vcmask 1041409
    %v144 = vsel %vm143, %v142, %v140
    %145 = vrot.lane.b32.xlu0 %v144, 72
    %v146 = vpop.permute.xlu0 %145
    %vm147 = vcmask 622144
    %148 = vst.msk [vmem:[#allocation0] sm:$0x3] %vm147, %v146
    %s149 = scalar_lea.vmem %s0, 17
    %v150 = vld [vmem:[%s149] sm:$0x1]
    %s151 = scalar_lea.vmem %s0, 48
    %v152 = vld [vmem:[%s151] sm:$0x2]
    %vm153 = vcmask 1041409
    %v154 = vsel %vm153, %v152, %v150
    %155 = vrot.lane.b32.xlu0 %v154, 68
    %v156 = vpop.permute.xlu0 %155
    %vm157 = vcmask 589344
    %158 = vst.msk [vmem:[#allocation0] sm:$0x3] %vm157, %v156
    %s159 = scalar_lea.vmem %s0, 16
    %v160 = vld [vmem:[%s159] sm:$0x1]
    %s161 = scalar_lea.vmem %s0, 47
    %v162 = vld [vmem:[%s161] sm:$0x2]
    %vm163 = vcmask 1041409
    %v164 = vsel %vm163, %v162, %v160
    %165 = vrot.lane.b32.xlu0 %v164, 64
    %v166 = vpop.permute.xlu0 %165
    %vm167 = vcmask 556544
    %168 = vst.msk [vmem:[#allocation0] sm:$0x3] %vm167, %v166
    %s169 = scalar_lea.vmem %s0, 15
    %v170 = vld [vmem:[%s169] sm:$0x1]
    %s171 = scalar_lea.vmem %s0, 46
    %v172 = vld [vmem:[%s171] sm:$0x2]
    %vm173 = vcmask 1041409
    %v174 = vsel %vm173, %v172, %v170
    %175 = vrot.lane.b32.xlu0 %v174, 60
    %v176 = vpop.permute.xlu0 %175
    %vm177 = vcmask 523744
    %178 = vst.msk [vmem:[#allocation0] sm:$0x3] %vm177, %v176
    %s179 = scalar_lea.vmem %s0, 14
    %v180 = vld [vmem:[%s179] sm:$0x1]
    %s181 = scalar_lea.vmem %s0, 45
    %v182 = vld [vmem:[%s181] sm:$0x2]
    %vm183 = vcmask 1041409
    %v184 = vsel %vm183, %v182, %v180
    %185 = vrot.lane.b32.xlu0 %v184, 56
    %v186 = vpop.permute.xlu0 %185
    %vm187 = vcmask 490944
    %188 = vst.msk [vmem:[#allocation0] sm:$0x3] %vm187, %v186
    %s189 = scalar_lea.vmem %s0, 13
    %v190 = vld [vmem:[%s189] sm:$0x1]
    %s191 = scalar_lea.vmem %s0, 44
    %v192 = vld [vmem:[%s191] sm:$0x2]
    %vm193 = vcmask 1041409
    %v194 = vsel %vm193, %v192, %v190
    %195 = vrot.lane.b32.xlu0 %v194, 52
    %v196 = vpop.permute.xlu0 %195
    %vm197 = vcmask 458144
    %198 = vst.msk [vmem:[#allocation0] sm:$0x3] %vm197, %v196
    %s199 = scalar_lea.vmem %s0, 12
    %v200 = vld [vmem:[%s199] sm:$0x1]
    %s201 = scalar_lea.vmem %s0, 43
    %v202 = vld [vmem:[%s201] sm:$0x2]
    %vm203 = vcmask 1041409
    %v204 = vsel %vm203, %v202, %v200
    %205 = vrot.lane.b32.xlu0 %v204, 48
    %v206 = vpop.permute.xlu0 %205
    %vm207 = vcmask 425344
    %208 = vst.msk [vmem:[#allocation0] sm:$0x3] %vm207, %v206
    %s209 = scalar_lea.vmem %s0, 11
    %v210 = vld [vmem:[%s209] sm:$0x1]
    %s211 = scalar_lea.vmem %s0, 42
    %v212 = vld [vmem:[%s211] sm:$0x2]
    %vm213 = vcmask 1041409
    %v214 = vsel %vm213, %v212, %v210
    %215 = vrot.lane.b32.xlu0 %v214, 44
    %v216 = vpop.permute.xlu0 %215
    %vm217 = vcmask 392544
    %218 = vst.msk [vmem:[#allocation0] sm:$0x3] %vm217, %v216
    %s219 = scalar_lea.vmem %s0, 10
    %v220 = vld [vmem:[%s219] sm:$0x1]
    %s221 = scalar_lea.vmem %s0, 41
    %v222 = vld [vmem:[%s221] sm:$0x2]
    %vm223 = vcmask 1041409
    %v224 = vsel %vm223, %v222, %v220
    %225 = vrot.lane.b32.xlu0 %v224, 40
    %v226 = vpop.permute.xlu0 %225
    %vm227 = vcmask 359744
    %228 = vst.msk [vmem:[#allocation0] sm:$0x3] %vm227, %v226
    %s229 = scalar_lea.vmem %s0, 9
    %v230 = vld [vmem:[%s229] sm:$0x1]
    %s231 = scalar_lea.vmem %s0, 40
    %v232 = vld [vmem:[%s231] sm:$0x2]
    %vm233 = vcmask 1041409
    %v234 = vsel %vm233, %v232, %v230
    %235 = vrot.lane.b32.xlu0 %v234, 36
    %v236 = vpop.permute.xlu0 %235
    %vm237 = vcmask 326944
    %238 = vst.msk [vmem:[#allocation0] sm:$0x3] %vm237, %v236
    %s239 = scalar_lea.vmem %s0, 8
    %v240 = vld [vmem:[%s239] sm:$0x1]
    %s241 = scalar_lea.vmem %s0, 39
    %v242 = vld [vmem:[%s241] sm:$0x2]
    %vm243 = vcmask 1041409
    %v244 = vsel %vm243, %v242, %v240
    %245 = vrot.lane.b32.xlu0 %v244, 32
    %v246 = vpop.permute.xlu0 %245
    %vm247 = vcmask 294144
    %248 = vst.msk [vmem:[#allocation0] sm:$0x3] %vm247, %v246
    %s249 = scalar_lea.vmem %s0, 7
    %v250 = vld [vmem:[%s249] sm:$0x1]
    %s251 = scalar_lea.vmem %s0, 38
    %v252 = vld [vmem:[%s251] sm:$0x2]
    %vm253 = vcmask 1041409
    %v254 = vsel %vm253, %v252, %v250
    %255 = vrot.lane.b32.xlu0 %v254, 28
    %v256 = vpop.permute.xlu0 %255
    %vm257 = vcmask 261344
    %258 = vst.msk [vmem:[#allocation0] sm:$0x3] %vm257, %v256
    %s259 = scalar_lea.vmem %s0, 6
    %v260 = vld [vmem:[%s259] sm:$0x1]
    %s261 = scalar_lea.vmem %s0, 37
    %v262 = vld [vmem:[%s261] sm:$0x2]
    %vm263 = vcmask 1041409
    %v264 = vsel %vm263, %v262, %v260
    %265 = vrot.lane.b32.xlu0 %v264, 24
    %v266 = vpop.permute.xlu0 %265
    %vm267 = vcmask 228544
    %268 = vst.msk [vmem:[#allocation0] sm:$0x3] %vm267, %v266
    %s269 = scalar_lea.vmem %s0, 5
    %v270 = vld [vmem:[%s269] sm:$0x1]
    %s271 = scalar_lea.vmem %s0, 36
    %v272 = vld [vmem:[%s271] sm:$0x2]
    %vm273 = vcmask 1041409
    %v274 = vsel %vm273, %v272, %v270
    %275 = vrot.lane.b32.xlu0 %v274, 20
    %v276 = vpop.permute.xlu0 %275
    %vm277 = vcmask 195744
    %278 = vst.msk [vmem:[#allocation0] sm:$0x3] %vm277, %v276
    %s279 = scalar_lea.vmem %s0, 4
    %v280 = vld [vmem:[%s279] sm:$0x1]
    %s281 = scalar_lea.vmem %s0, 35
    %v282 = vld [vmem:[%s281] sm:$0x2]
    %vm283 = vcmask 1041409
    %v284 = vsel %vm283, %v282, %v280
    %285 = vrot.lane.b32.xlu0 %v284, 16
    %v286 = vpop.permute.xlu0 %285
    %vm287 = vcmask 162944
    %288 = vst.msk [vmem:[#allocation0] sm:$0x3] %vm287, %v286
    %s289 = scalar_lea.vmem %s0, 3
    %v290 = vld [vmem:[%s289] sm:$0x1]
    %s291 = scalar_lea.vmem %s0, 34
    %v292 = vld [vmem:[%s291] sm:$0x2]
    %vm293 = vcmask 1041409
    %v294 = vsel %vm293, %v292, %v290
    %295 = vrot.lane.b32.xlu0 %v294, 12
    %v296 = vpop.permute.xlu0 %295
    %vm297 = vcmask 130144
    %298 = vst.msk [vmem:[#allocation0] sm:$0x3] %vm297, %v296
    %s299 = scalar_lea.vmem %s0, 2
    %v300 = vld [vmem:[%s299] sm:$0x1]
    %s301 = scalar_lea.vmem %s0, 33
    %v302 = vld [vmem:[%s301] sm:$0x2]
    %vm303 = vcmask 1041409
    %v304 = vsel %vm303, %v302, %v300
    %305 = vrot.lane.b32.xlu0 %v304, 8
    %v306 = vpop.permute.xlu0 %305
    %vm307 = vcmask 97344
    %308 = vst.msk [vmem:[#allocation0] sm:$0x3] %vm307, %v306
    %s309 = scalar_lea.vmem %s0, 1
    %v310 = vld [vmem:[%s309] sm:$0x1]
    %s311 = scalar_lea.vmem %s0, 32
    %v312 = vld [vmem:[%s311] sm:$0x2]
    %vm313 = vcmask 1041409
    %v314 = vsel %vm313, %v312, %v310
    %315 = vrot.lane.b32.xlu0 %v314, 4
    %v316 = vpop.permute.xlu0 %315
    %vm317 = vcmask 64544
    %318 = vst.msk [vmem:[#allocation0] sm:$0x3] %vm317, %v316
    %s320 = ssub.s32 4, 1
    %v321 = vld [vmem:[#allocation0] sm:%s320]
    %s323 = ssub.s32 4, 1
    %324 = vst [vmem:[%s1] sm:%s323] %v321

// kernel: depthwise_conv2d.1
$region0: #{depthwise_conv2d.1}
  #allocation0 [shape = 'u32[]', space=smem, size = 0x4, offset = 0x4, fixed_abs, tag = 'smem constant byte address 0x4 - core index']
  #allocation1 [shape = 'u32[72,128]{1,0:T(1,128)}', space=vmem, size = 0x9000, scoped, tag = 'internal scratch']
  %s0 = inlined_call_operand.vmem [shape: f32[2,16,128], index: 0, kind: input, shape index: {}]
  %s1 = inlined_call_operand.vmem [shape: f32[18,128], index: 1, kind: input, shape index: {}]
  %s2 = inlined_call_operand.vmem [shape: f32[2,128], index: 2, kind: input, shape index: {}]
  %s3 = inlined_call_operand.vmem [shape: f32[2,2,14,128], index: 3, kind: output, shape index: {}]
  %s4 = sld [smem:[#allocation0]]
  $region45: #{depthwise_conv2d.1} parent=0
    _
  %s6 = ssub.s32 1, %s4
  %s7 = scalar_select 0, %s6, %s4
  loop: start=0, step=1, limit=4
  $region2: #{depthwise_conv2d.1} parent=0 // loop_pre_header
    _
  $region3: #{depthwise_conv2d.1} parent=0 // loop_header
    %s9 = sphi 0, %s13
    %p10 = scmp.ge.s32.totalorder %s9, 4
    %s19 = sphi 0, %s21
    %s22 = sphi 0, %s19
    %s23 = sphi 0, %s22
    %s39 = sphi 0, %s23
    %s43 = sphi 0, %s43
    %s45 = sphi 0, %s43
    %s46 = sphi 0, %s45
    %s60 = sphi 0, %s46
    %s64 = sphi 0, %s64
    %s66 = sphi 0, %s64
    %s67 = sphi 0, %s66
    %s81 = sphi 0, %s67
    %s87 = sphi 0, %s89
    %s90 = sphi 0, %s87
    %s91 = sphi 0, %s90
    %s107 = sphi 0, %s91
  $region4: #{depthwise_conv2d.1} parent=0 // loop_header_branch
    %12 = sbr.rel (%p10) target = $region8
  $region5: #{depthwise_conv2d.1} parent=0 // loop_body
    %s14 = ssub.s32 %s9, 1
    %s15 = ssub.s32 %s9, 2
    %s16 = sadd.s32 %s9, 1
    %s17 = ssub.s32 %s9, %s16
    %p18 = scmp.eq.s32.totalorder %s17, 0
    %s20 = sadd.s32 %s19, 1
    %s21 = scalar_select %p18, %s19, %s20
    %p24 = pneg %p18
    %p25 = scmp.eq.s32.totalorder %s9, 1
    %p26 = por %p24, %p25
    %p27 = scmp.ne.s32.totalorder %s19, %s22
    %p28 = scmp.eq.s32.totalorder %s9, 0
    %p29 = por %p27, %p28
    %p30 = scmp.ne.s32.totalorder %s19, %s22
    %p31 = scmp.eq.s32.totalorder %s14, 1
    %p32 = por %p30, %p31
    %p33 = scmp.ne.s32.totalorder %s22, %s23
    %p34 = scmp.eq.s32.totalorder %s14, 0
    %p35 = por %p33, %p34
    %p36 = scmp.ne.s32.totalorder %s22, %s23
    %p37 = scmp.eq.s32.totalorder %s15, 1
    %p38 = por %p36, %p37
    %p40 = scmp.ne.s32.totalorder %s23, %s39
    %p41 = scmp.eq.s32.totalorder %s15, 0
    %p42 = por %p40, %p41
    %s44 = sadd.s32 %s43, 1
    %p47 = scmp.eq.s32.totalorder %s9, 1
    %p48 = scmp.ne.s32.totalorder %s43, %s45
    %p49 = scmp.eq.s32.totalorder %s9, 0
    %p50 = por %p48, %p49
    %p51 = scmp.ne.s32.totalorder %s43, %s45
    %p52 = scmp.eq.s32.totalorder %s14, 1
    %p53 = por %p51, %p52
    %p54 = scmp.ne.s32.totalorder %s45, %s46
    %p55 = scmp.eq.s32.totalorder %s14, 0
    %p56 = por %p54, %p55
    %p57 = scmp.ne.s32.totalorder %s45, %s46
    %p58 = scmp.eq.s32.totalorder %s15, 1
    %p59 = por %p57, %p58
    %p61 = scmp.ne.s32.totalorder %s46, %s60
    %p62 = scmp.eq.s32.totalorder %s15, 0
    %p63 = por %p61, %p62
    %s65 = sadd.s32 %s64, 1
    %p68 = scmp.eq.s32.totalorder %s9, 1
    %p69 = scmp.ne.s32.totalorder %s64, %s66
    %p70 = scmp.eq.s32.totalorder %s9, 0
    %p71 = por %p69, %p70
    %p72 = scmp.ne.s32.totalorder %s64, %s66
    %p73 = scmp.eq.s32.totalorder %s14, 1
    %p74 = por %p72, %p73
    %p75 = scmp.ne.s32.totalorder %s66, %s67
    %p76 = scmp.eq.s32.totalorder %s14, 0
    %p77 = por %p75, %p76
    %p78 = scmp.ne.s32.totalorder %s66, %s67
    %p79 = scmp.eq.s32.totalorder %s15, 1
    %p80 = por %p78, %p79
    %p82 = scmp.ne.s32.totalorder %s67, %s81
    %p83 = scmp.eq.s32.totalorder %s15, 0
    %p84 = por %p82, %p83
    %s85 = ssub.s32 %s9, %s16
    %p86 = scmp.eq.s32.totalorder %s85, 0
    %s88 = sadd.s32 %s87, 1
    %s89 = scalar_select %p86, %s87, %s88
    %p92 = pneg %p86
    %p93 = scmp.eq.s32.totalorder %s9, 1
    %p94 = por %p92, %p93
    %p95 = scmp.ne.s32.totalorder %s87, %s90
    %p96 = scmp.eq.s32.totalorder %s9, 0
    %p97 = por %p95, %p96
    %p98 = scmp.ne.s32.totalorder %s87, %s90
    %p99 = scmp.eq.s32.totalorder %s14, 1
    %p100 = por %p98, %p99
    %p101 = scmp.ne.s32.totalorder %s90, %s91
    %p102 = scmp.eq.s32.totalorder %s14, 0
    %p103 = por %p101, %p102
    %p104 = scmp.ne.s32.totalorder %s90, %s91
    %p105 = scmp.eq.s32.totalorder %s15, 1
    %p106 = por %p104, %p105
    %p108 = scmp.ne.s32.totalorder %s91, %s107
    %p109 = scmp.eq.s32.totalorder %s15, 0
    %p110 = por %p108, %p109
    %p111 = scmp.le.s32.totalorder 1, %s9
    %p112 = scmp.lt.s32.totalorder %s9, 3
    %p113 = pnand %p111, %p112
    %p114 = pneg %p113
    // Predicated region
    $region9: #{depthwise_conv2d.1} parent=5 // pred_check
      _
    $region10: #{depthwise_conv2d.1} parent=5 // pred_check_branch
      %116 = sbr.rel (%p113) target = $region12
    $region11: #{depthwise_conv2d.1} parent=5 // pred_region
      %s117 = ssub.s32 %s9, 1
      // Predicated region
      $region13: #{depthwise_conv2d.1} parent=11 // pred_check
        %p118 = pneg %p56
      $region14: #{depthwise_conv2d.1} parent=11 // pred_check_branch
        %120 = sbr.rel (%p118) target = $region16
      $region15: #{depthwise_conv2d.1} parent=11 // pred_region
        _
      $region16: #{depthwise_conv2d.1} parent=11 // pred_fallthru
        _
      // Predicated region
      $region17: #{depthwise_conv2d.1} parent=11 // pred_check
        %p121 = pneg %p77
      $region18: #{depthwise_conv2d.1} parent=11 // pred_check_branch
        %123 = sbr.rel (%p121) target = $region20
      $region19: #{depthwise_conv2d.1} parent=11 // pred_region
        _
      $region20: #{depthwise_conv2d.1} parent=11 // pred_fallthru
        _
    $region12: #{depthwise_conv2d.1} parent=5 // pred_fallthru
      _
    %p124 = scmp.lt.s32.totalorder %s9, 2
    // Predicated region
    $region21: #{depthwise_conv2d.1} parent=5 // pred_check
      %p125 = pneg %p124
    $region22: #{depthwise_conv2d.1} parent=5 // pred_check_branch
      %127 = sbr.rel (%p125) target = $region24
    $region23: #{depthwise_conv2d.1} parent=5 // pred_region
      // Predicated region
      $region25: #{depthwise_conv2d.1} parent=23 // pred_check
        %p128 = pneg %p29
      $region26: #{depthwise_conv2d.1} parent=23 // pred_check_branch
        %130 = sbr.rel (%p128) target = $region28
      $region27: #{depthwise_conv2d.1} parent=23 // pred_region
        %p131 = scmp.lt.s32.totalorder %s9, 1
        %s132 = scalar_select %p131, %s9, 1
        %s133 = smul.addr %s132, 2
        %s134 = smul.addr %s133, 8
        %s135 = scalar_lea.vmem %s0, %s134
      $region28: #{depthwise_conv2d.1} parent=23 // pred_fallthru
        _
    $region24: #{depthwise_conv2d.1} parent=5 // pred_fallthru
      _
    %p136 = scmp.le.s32.totalorder 1, %s9
    %p137 = scmp.lt.s32.totalorder %s9, 3
    %p138 = pnand %p136, %p137
    %p139 = pneg %p138
    // Predicated region
    $region29: #{depthwise_conv2d.1} parent=5 // pred_check
      _
    $region30: #{depthwise_conv2d.1} parent=5 // pred_check_branch
      %141 = sbr.rel (%p138) target = $region32
    $region31: #{depthwise_conv2d.1} parent=5 // pred_region
      %s142 = ssub.s32 %s9, 1
      %p143 = scmp.lt.s32.totalorder %s14, 1
      %s144 = scalar_select %p143, %s14, 1
      %s145 = smul.addr %s144, 2
      %s146 = smul.addr %s145, 8
      %s147 = scalar_lea.vmem %s0, %s146
      %p148 = pneg %p35
      %p149 = pneg %p32
      %p150 = pneg %p56
      %p151 = pneg %p53
      %p152 = pneg %p77
      %p153 = pneg %p74
      %p154 = pneg %p103
      %p155 = pneg %p100
      %p156 = scmp.lt.s32.totalorder %s14, 1
      %s157 = scalar_select %p156, %s14, 1
      %s158 = smul.addr %s157, 4
      %s159 = smul.addr %s158, 8
      %s160 = scalar_lea.vmem %s3, %s159
      %p161 = scmp.lt.s32.totalorder %s14, 1
      %s162 = scalar_select %p161, %s14, 1
      %s163 = smul.addr %s162, 2
      %s164 = smul.addr %s163, 8
      %s165 = scalar_lea.vmem %s0, %s164
      %p166 = scmp.lt.s32.totalorder %s14, 1
      %s167 = scalar_select %p166, %s14, 1
      %s168 = smul.addr %s167, 4
      %s169 = smul.addr %s168, 8
      %s170 = scalar_lea.vmem %s3, %s169
      %v171 = vld [vmem:[%s165] sm:$0xff]
      %v172 = vld [vmem:[%s165 + $0x8] sm:$0xff]
      %v173 = vld [vmem:[%s1] sm:$0x1]
      %v174 = vperm.slane %v173, 0
      %v175 = vmul.f32 %v174, %v171
      %v176 = vmul.f32 %v174, %v172
      %v177 = vld [vmem:[%s2] sm:$0x1]
      %v178 = vperm.slane %v177, 0
      %v179 = vadd.f32 %v178, %v175
      %v180 = vadd.f32 %v178, %v176
      %v181 = vld [vmem:[%s1 + $0x1] sm:$0x1]
      %v182 = vperm.slane %v181, 0
      %v183 = vmul.f32 %v182, %v171
      %v184 = vmul.f32 %v182, %v172
      %v185 = vld [vmem:[%s2 + $0x1] sm:$0x1]
      %v186 = vperm.slane %v185, 0
      %v187 = vadd.f32 %v186, %v183
      %v188 = vadd.f32 %v186, %v184
      %189 = vrot.lane.b32.xlu0 %v171, 124
      %v190 = vpop.permute.xlu0 %189
      %191 = vrot.lane.b32.xlu0 %v172, 124
      %v192 = vpop.permute.xlu0 %191
      %v193 = vld [vmem:[%s1 + $0x2] sm:$0x1]
      %v194 = vperm.slane %v193, 0
      %v195 = vmul.f32 %v194, %v190
      %v196 = vmul.f32 %v194, %v192
      %v197 = vadd.f32 %v179, %v195
      %v198 = vadd.f32 %v180, %v196
      %v199 = vld [vmem:[%s1 + $0x3] sm:$0x1]
      %v200 = vperm.slane %v199, 0
      %v201 = vmul.f32 %v200, %v190
      %v202 = vmul.f32 %v200, %v192
      %v203 = vadd.f32 %v187, %v201
      %v204 = vadd.f32 %v188, %v202
      %205 = vrot.lane.b32.xlu0 %v171, 120
      %v206 = vpop.permute.xlu0 %205
      %207 = vrot.lane.b32.xlu0 %v172, 120
      %v208 = vpop.permute.xlu0 %207
      %v209 = vld [vmem:[%s1 + $0x4] sm:$0x1]
      %v210 = vperm.slane %v209, 0
      %v211 = vmul.f32 %v210, %v206
      %v212 = vmul.f32 %v210, %v208
      %v213 = vadd.f32 %v197, %v211
      %v214 = vadd.f32 %v198, %v212
      %v215 = vld [vmem:[%s1 + $0x5] sm:$0x1]
      %v216 = vperm.slane %v215, 0
      %v217 = vmul.f32 %v216, %v206
      %v218 = vmul.f32 %v216, %v208
      %v219 = vadd.f32 %v203, %v217
      %v220 = vadd.f32 %v204, %v218
      %v221 = vld [vmem:[%s1 + $0x6] sm:$0x1]
      %v222 = vperm.slane %v221, 0
      %v223 = vmul.f32 %v222, %v171
      %v224 = vmul.f32 %v222, %v172
      %vm227 = vcmask 1046528
      %v228 = vrot.slane %v223, 1
      %v229 = vrot.slane %v224, 1
      %v230 = vsel %vm227, %v228, %v229
      %v233 = vadd.f32 %v213, %v230
      %v234 = vadd.f32 %v214, %v229
      %v235 = vld [vmem:[%s1 + $0x7] sm:$0x1]
      %v236 = vperm.slane %v235, 0
      %v237 = vmul.f32 %v236, %v171
      %v238 = vmul.f32 %v236, %v172
      %v241 = vrot.slane %v237, 1
      %v242 = vrot.slane %v238, 1
      %v243 = vsel %vm227, %v241, %v242
      %v246 = vadd.f32 %v219, %v243
      %v247 = vadd.f32 %v220, %v242
      %v250 = vrot.slane %v171, 1
      %v251 = vrot.slane %v172, 1
      %v252 = vsel %vm227, %v250, %v251
      %255 = vrot.lane.b32.xlu0 %v252, 124
      %v256 = vpop.permute.xlu0 %255
      %257 = vrot.lane.b32.xlu0 %v251, 124
      %v258 = vpop.permute.xlu0 %257
      %v259 = vld [vmem:[%s1 + $0x8] sm:$0x1]
      %v260 = vperm.slane %v259, 0
      %v261 = vmul.f32 %v260, %v256
      %v262 = vmul.f32 %v260, %v258
      %v263 = vadd.f32 %v233, %v261
      %v264 = vadd.f32 %v234, %v262
      %v265 = vld [vmem:[%s1 + $0x9] sm:$0x1]
      %v266 = vperm.slane %v265, 0
      %v267 = vmul.f32 %v266, %v256
      %v268 = vmul.f32 %v266, %v258
      %v269 = vadd.f32 %v246, %v267
      %v270 = vadd.f32 %v247, %v268
      %271 = vrot.lane.b32.xlu0 %v252, 120
      %v272 = vpop.permute.xlu0 %271
      %273 = vrot.lane.b32.xlu0 %v251, 120
      %v274 = vpop.permute.xlu0 %273
      %v275 = vld [vmem:[%s1 + $0xa] sm:$0x1]
      %v276 = vperm.slane %v275, 0
      %v277 = vmul.f32 %v276, %v272
      %v278 = vmul.f32 %v276, %v274
      %v279 = vadd.f32 %v263, %v277
      %v280 = vadd.f32 %v264, %v278
      %v281 = vld [vmem:[%s1 + $0xb] sm:$0x1]
      %v282 = vperm.slane %v281, 0
      %v283 = vmul.f32 %v282, %v272
      %v284 = vmul.f32 %v282, %v274
      %v285 = vadd.f32 %v269, %v283
      %v286 = vadd.f32 %v270, %v284
      %v287 = vld [vmem:[%s1 + $0xc] sm:$0x1]
      %v288 = vperm.slane %v287, 0
      %v289 = vmul.f32 %v288, %v171
      %v290 = vmul.f32 %v288, %v172
      %vm293 = vcmask 1045504
      %v294 = vrot.slane %v289, 2
      %v295 = vrot.slane %v290, 2
      %v296 = vsel %vm293, %v294, %v295
      %v299 = vadd.f32 %v279, %v296
      %v300 = vadd.f32 %v280, %v295
      %v301 = vld [vmem:[%s1 + $0xd] sm:$0x1]
      %v302 = vperm.slane %v301, 0
      %v303 = vmul.f32 %v302, %v171
      %v304 = vmul.f32 %v302, %v172
      %v307 = vrot.slane %v303, 2
      %v308 = vrot.slane %v304, 2
      %v309 = vsel %vm293, %v307, %v308
      %v312 = vadd.f32 %v285, %v309
      %v313 = vadd.f32 %v286, %v308
      %v314 = vrot.slane %v171, 2
      %v315 = vrot.slane %v172, 2
      %v316 = vsel %vm293, %v314, %v315
      %319 = vrot.lane.b32.xlu0 %v316, 124
      %v320 = vpop.permute.xlu0 %319
      %321 = vrot.lane.b32.xlu0 %v315, 124
      %v322 = vpop.permute.xlu0 %321
      %v323 = vld [vmem:[%s1 + $0xe] sm:$0x1]
      %v324 = vperm.slane %v323, 0
      %v325 = vmul.f32 %v324, %v320
      %v326 = vmul.f32 %v324, %v322
      %v327 = vadd.f32 %v299, %v325
      %v328 = vadd.f32 %v300, %v326
      %v329 = vld [vmem:[%s1 + $0xf] sm:$0x1]
      %v330 = vperm.slane %v329, 0
      %v331 = vmul.f32 %v330, %v320
      %v332 = vmul.f32 %v330, %v322
      %v333 = vadd.f32 %v312, %v331
      %v334 = vadd.f32 %v313, %v332
      %335 = vrot.lane.b32.xlu0 %v316, 120
      %v336 = vpop.permute.xlu0 %335
      %337 = vrot.lane.b32.xlu0 %v315, 120
      %v338 = vpop.permute.xlu0 %337
      %v339 = vld [vmem:[%s1 + $0x10] sm:$0x1]
      %v340 = vperm.slane %v339, 0
      %v341 = vmul.f32 %v340, %v336
      %v342 = vmul.f32 %v340, %v338
      %v343 = vadd.f32 %v327, %v341
      %v344 = vadd.f32 %v328, %v342
      %v345 = vld [vmem:[%s1 + $0x11] sm:$0x1]
      %v346 = vperm.slane %v345, 0
      %v347 = vmul.f32 %v346, %v336
      %v348 = vmul.f32 %v346, %v338
      %v349 = vadd.f32 %v333, %v347
      %v350 = vadd.f32 %v334, %v348
      %351 = vst [vmem:[%s170] sm:$0xff] %v343
      %352 = vst [vmem:[%s170 + $0x8] sm:$0x3f] %v344
      %s353 = scalar_lea.vmem %s170, 16
      %354 = vst [vmem:[%s353] sm:$0xff] %v349
      %355 = vst [vmem:[%s353 + $0x8] sm:$0x3f] %v350
      %p356 = scmp.lt.s32.totalorder %s14, 1
      %s357 = scalar_select %p356, %s14, 1
      %s358 = smul.addr %s357, 4
      %s359 = smul.addr %s358, 8
      %s360 = scalar_lea.vmem %s3, %s359
      // Predicated region
      $region33: #{depthwise_conv2d.1} parent=31 // pred_check
        %p361 = pneg %p100
      $region34: #{depthwise_conv2d.1} parent=31 // pred_check_branch
        %363 = sbr.rel (%p361) target = $region36
      $region35: #{depthwise_conv2d.1} parent=31 // pred_region
        _
      $region36: #{depthwise_conv2d.1} parent=31 // pred_fallthru
        _
    $region32: #{depthwise_conv2d.1} parent=5 // pred_fallthru
      _
    %p364 = scmp.le.s32.totalorder 2, %s9
    // Predicated region
    $region37: #{depthwise_conv2d.1} parent=5 // pred_check
      %p365 = pneg %p364
    $region38: #{depthwise_conv2d.1} parent=5 // pred_check_branch
      %367 = sbr.rel (%p365) target = $region40
    $region39: #{depthwise_conv2d.1} parent=5 // pred_region
      %s368 = ssub.s32 %s9, 2
      // Predicated region
      $region41: #{depthwise_conv2d.1} parent=39 // pred_check
        %p369 = pneg %p106
      $region42: #{depthwise_conv2d.1} parent=39 // pred_check_branch
        %371 = sbr.rel (%p369) target = $region44
      $region43: #{depthwise_conv2d.1} parent=39 // pred_region
        %p372 = scmp.lt.s32.totalorder %s15, 1
        %s373 = scalar_select %p372, %s15, 1
        %s374 = smul.addr %s373, 4
        %s375 = smul.addr %s374, 8
        %s376 = scalar_lea.vmem %s3, %s375
      $region44: #{depthwise_conv2d.1} parent=39 // pred_fallthru
        _
    $region40: #{depthwise_conv2d.1} parent=5 // pred_fallthru
      _
  $region6: #{depthwise_conv2d.1} parent=0 // loop_footer
    %s13 = sadd.s32 1, %s9
  $region7: #{depthwise_conv2d.1} parent=0 // loop_footer_branch
    %8 = sbr.rel target = $region3
  $region8: #{depthwise_conv2d.1} parent=0 // loop_exit
    _

</llo_original>
